<compile_context>
chip_gen: v7x
topology: tpu7x:2x2x1
jax: 0.10.0
libtpu: 0.0.40
codegen_flags: <defaults>
</compile_context>

<pallas_src>
import jax
import jax.numpy as jnp
from jax.experimental import pallas as pl
from jax.experimental.pallas import tpu as pltpu


def _vse_kernel(vis_ref, sem_ref, wa_ref, ba_ref, wg_ref, bg_ref,
                out_ref, x_scratch):
    """One block of TB graphs per grid step.

    vis_ref : [TB, n_img, D]   visual embeddings
    sem_ref : [TB, n_sem, D]   semantic embeddings
    wa/ba   : [D, Dh] / [1, Dh]  adjacency-learner linear (bf16 / f32)
    wg/bg   : [D, D]  / [1, D]   GCN layer linear          (bf16 / f32)
    out_ref : [TB, D]          mean over nodes
    x_scratch : VMEM [TB, N, D] f32 — joint embedding assembled in-kernel
    """
    TB, n_img, D = vis_ref.shape
    n_sem = sem_ref.shape[1]
    N = n_img + n_sem

    # Assemble the joint embedding for this block of graphs directly in VMEM
    # (replaces the wrapper-side jnp.concatenate -> saves a full HBM pass).
    x_scratch[:, :n_img, :] = vis_ref[...]
    x_scratch[:, n_img:, :] = sem_ref[...]
    x = x_scratch[...]                                      # [TB, N, D] f32
    x_bf = x.astype(jnp.bfloat16)

    # --- AdjMatrixEdgeLearner: h = tanh(X Wa + ba) ------------------------
    # Flatten all graphs in the block into one big GEMM for MXU fill.
    x2 = x_bf.reshape(TB * N, D)
    h = jnp.tanh(jnp.dot(x2, wa_ref[...],
                         preferred_element_type=jnp.float32) + ba_ref[...])
    Dh = h.shape[-1]
    h = h.reshape(TB, N, Dh).astype(jnp.bfloat16)

    # Per-graph similarity + row softmax: A = softmax(h h^T, axis=-1)
    s = jax.lax.dot_general(h, h,
                            dimension_numbers=(((2,), (2,)), ((0,), (0,))),
                            preferred_element_type=jnp.float32)  # [TB, N, N]
    s = s - jnp.max(s, axis=-1, keepdims=True)
    e = jnp.exp(s)
    adj = e * pl.reciprocal(jnp.sum(e, axis=-1, keepdims=True), approx=True)

    # --- GCNEncoder (1 layer): relu(A X Wg + bg) --------------------------
    ax = jax.lax.dot_general(adj.astype(jnp.bfloat16), x_bf,
                             dimension_numbers=(((2,), (1,)), ((0,), (0,))),
                             preferred_element_type=jnp.float32)  # [TB, N, D]
    y = jnp.dot(ax.reshape(TB * N, D).astype(jnp.bfloat16), wg_ref[...],
                preferred_element_type=jnp.float32) + bg_ref[...]
    y = jnp.maximum(y, 0.0).reshape(TB, N, D)

    # Mean over the node axis -> dense (TB, D) output block.
    out_ref[...] = jnp.mean(y, axis=1)


def visual_semantic_encoder(vis_embed, sem_embed, params, *, target_rows=256):
    """vis_embed [bs, n_img, D], sem_embed [bs, n_know, D] -> [bs, D]."""
    bs, n_img, D = vis_embed.shape
    _, n_know, _ = sem_embed.shape
    N = n_img + n_know
    Dh = params["adj_w"].shape[1]

    # Batch multiple graphs per grid step so the flattened GEMM has
    # >= ~target_rows rows (MXU fill), capped by the actual batch size.
    TB = max(1, min(bs, max(1, target_rows // N)))
    bs_pad = pl.cdiv(bs, TB) * TB
    if bs_pad != bs:
        pad = bs_pad - bs
        vis_embed = jnp.pad(vis_embed, ((0, pad), (0, 0), (0, 0)))
        sem_embed = jnp.pad(sem_embed, ((0, pad), (0, 0), (0, 0)))

    # bf16 weights: half the weight DMA / VMEM footprint; f32 accumulation
    # happens inside the MXU. Biases stay f32.
    wa = params["adj_w"].astype(jnp.bfloat16)               # [D, Dh]
    ba = params["adj_b"].reshape(1, Dh).astype(jnp.float32)
    wg = params["gcn_w"].astype(jnp.bfloat16)               # [D, D]
    bg = params["gcn_b"].reshape(1, D).astype(jnp.float32)

    # NOTE: for production hidden sizes on v7x, single-buffer the grid-invariant
    # weight specs (pipeline_mode=pl.Buffered(1)) and set vmem_limit_bytes.
    out = pl.pallas_call(
        _vse_kernel,
        out_shape=jax.ShapeDtypeStruct((bs_pad, D), jnp.float32),
        grid=(bs_pad // TB,),
        in_specs=[
            pl.BlockSpec((TB, n_img, D), lambda b: (b, 0, 0)),   # vis
            pl.BlockSpec((TB, n_know, D), lambda b: (b, 0, 0)),  # sem
            pl.BlockSpec((D, Dh), lambda b: (0, 0)),             # adj W
            pl.BlockSpec((1, Dh), lambda b: (0, 0)),             # adj b
            pl.BlockSpec((D, D), lambda b: (0, 0)),              # gcn W
            pl.BlockSpec((1, D), lambda b: (0, 0)),              # gcn b
        ],
        out_specs=pl.BlockSpec((TB, D), lambda b: (b, 0)),
        scratch_shapes=[pltpu.VMEM((TB, N, D), jnp.float32)],
        compiler_params=pltpu.CompilerParams(
            dimension_semantics=("parallel",)),
    )(vis_embed, sem_embed, wa, ba, wg, bg)
    return out[:bs]


def init_params(key, hidden_dim):
    """Deterministic synthetic parameter init (matches module shapes)."""
    D = hidden_dim
    Dh = max(1, D // 4)
    ks = jax.random.split(key, 4)
    return {
        # AdjMatrixEdgeLearner linear (D -> D//4)
        "adj_w": jax.random.normal(ks[0], (D, Dh), jnp.float32) / jnp.sqrt(D),
        "adj_b": jax.random.normal(ks[1], (Dh,), jnp.float32) * 0.01,
        # GCNEncoder single layer linear (D -> D)
        "gcn_w": jax.random.normal(ks[2], (D, D), jnp.float32) / jnp.sqrt(D),
        "gcn_b": jax.random.normal(ks[3], (D,), jnp.float32) * 0.01,
    }


def reference_forward(vis, sem, params):
    """Pure-JAX f32 reference for correctness checking."""
    joint = jnp.concatenate([vis, sem], axis=1)              # [bs, N, D]
    h = jnp.tanh(joint @ params["adj_w"] + params["adj_b"])
    s = jnp.einsum("bnd,bmd->bnm", h, h)
    adj = jax.nn.softmax(s, axis=-1)
    y = jnp.maximum(jnp.einsum("bnm,bmd->bnd", adj, joint) @ params["gcn_w"]
                    + params["gcn_b"], 0.0)
    return y.mean(1)


if __name__ == "__main__":
    key = jax.random.PRNGKey(0)
    k_vis, k_sem, k_par = jax.random.split(key, 3)

    bs, n_img, n_know, hidden = 2, 8, 8, 32
    vis = jax.random.normal(k_vis, (bs, n_img, hidden), jnp.float32)
    sem = jax.random.normal(k_sem, (bs, n_know, hidden), jnp.float32)
    params = init_params(k_par, hidden)

    out = visual_semantic_encoder(vis, sem, params)
    out = jax.block_until_ready(out)

    ref = reference_forward(vis, sem, params)
    assert out.shape == (bs, hidden)
    # bf16 MXU operands vs f32 reference -> loosened tolerance (expected drift).
    assert jnp.allclose(out, ref, atol=5e-2, rtol=5e-2), "mismatch vs reference"

    print("KERNEL_OK")
</pallas_src>

<mosaic_0001>
module attributes {stable_mosaic.version = 11 : i64} {
  func.func @_vse_kernel(%arg0: i32, %arg1: memref<2x8x32xf32, #tpu.memory_space<vmem>>, %arg2: memref<2x8x32xf32, #tpu.memory_space<vmem>>, %arg3: memref<32x8xbf16, #tpu.memory_space<vmem>>, %arg4: memref<1x8xf32, #tpu.memory_space<vmem>>, %arg5: memref<32x32xbf16, #tpu.memory_space<vmem>>, %arg6: memref<1x32xf32, #tpu.memory_space<vmem>>, %arg7: memref<2x32xf32, #tpu.memory_space<vmem>>, %arg8: memref<2x16x32xf32, #tpu.memory_space<vmem>>) attributes {dimension_semantics = [#tpu.dimension_semantics<parallel>], iteration_bounds = array<i64: 1>, scalar_prefetch = 0 : i64, scratch_operands = 1 : i64, tpu.core_type = #tpu.core_type<tc>, window_params = [{transform_indices = @transform_0, window_bounds = array<i64: 2, 8, 32>}, {transform_indices = @transform_1, window_bounds = array<i64: 2, 8, 32>}, {pipeline_mode = #tpu.pipeline_mode<synchronous>, transform_indices = @transform_2, window_bounds = array<i64: 32, 8>}, {pipeline_mode = #tpu.pipeline_mode<synchronous>, transform_indices = @transform_3, window_bounds = array<i64: 1, 8>}, {pipeline_mode = #tpu.pipeline_mode<synchronous>, transform_indices = @transform_4, window_bounds = array<i64: 32, 32>}, {pipeline_mode = #tpu.pipeline_mode<synchronous>, transform_indices = @transform_5, window_bounds = array<i64: 1, 32>}, {transform_indices = @transform_6, window_bounds = array<i64: 2, 32>}]} {
    %c0 = arith.constant 0 : index
    %c0_0 = arith.constant 0 : index
    %c0_1 = arith.constant 0 : index
    %0 = vector.load %arg1[%c0, %c0_0, %c0_1] : memref<2x8x32xf32, #tpu.memory_space<vmem>>, vector<2x8x32xf32>
    %c0_2 = arith.constant 0 : index
    %c0_3 = arith.constant 0 : index
    %c0_4 = arith.constant 0 : index
    %1 = vector.load %arg8[%c0_2, %c0_3, %c0_4] : memref<2x16x32xf32, #tpu.memory_space<vmem>>, vector<2x8x32xf32>
    tpu.vector_store %arg8[%c0_2, %c0_3, %c0_4], %0 {strides = array<i32>} : memref<2x16x32xf32, #tpu.memory_space<vmem>>, vector<2x8x32xf32>,
    %c0_5 = arith.constant 0 : index
    %c0_6 = arith.constant 0 : index
    %c0_7 = arith.constant 0 : index
    %2 = vector.load %arg2[%c0_5, %c0_6, %c0_7] : memref<2x8x32xf32, #tpu.memory_space<vmem>>, vector<2x8x32xf32>
    %c0_8 = arith.constant 0 : index
    %c8 = arith.constant 8 : index
    %c0_9 = arith.constant 0 : index
    %3 = vector.load %arg8[%c0_8, %c8, %c0_9] : memref<2x16x32xf32, #tpu.memory_space<vmem>>, vector<2x8x32xf32>
    tpu.vector_store %arg8[%c0_8, %c8, %c0_9], %2 {strides = array<i32>} : memref<2x16x32xf32, #tpu.memory_space<vmem>>, vector<2x8x32xf32>,
    %c0_10 = arith.constant 0 : index
    %c0_11 = arith.constant 0 : index
    %c0_12 = arith.constant 0 : index
    %4 = vector.load %arg8[%c0_10, %c0_11, %c0_12] : memref<2x16x32xf32, #tpu.memory_space<vmem>>, vector<2x16x32xf32>
    %5 = arith.truncf %4 : vector<2x16x32xf32> to vector<2x16x32xbf16>
    %6 = vector.shape_cast %5 : vector<2x16x32xbf16> to vector<32x32xbf16>
    %c0_13 = arith.constant 0 : index
    %c0_14 = arith.constant 0 : index
    %7 = vector.load %arg3[%c0_13, %c0_14] : memref<32x8xbf16, #tpu.memory_space<vmem>>, vector<32x8xbf16>
    %cst = arith.constant dense<0.000000e+00> : vector<32x8xf32>
    %8 = tpu.matmul %6, %7, %cst {dimension_numbers = #tpu.dot_dimension_numbers<[1], [0], [0], [1], [0, 0, 1, 1], [], []>} : vector<32x32xbf16>, vector<32x8xbf16>, vector<32x8xf32> -> vector<32x8xf32>
    %c0_15 = arith.constant 0 : index
    %c0_16 = arith.constant 0 : index
    %9 = vector.load %arg4[%c0_15, %c0_16] : memref<1x8xf32, #tpu.memory_space<vmem>>, vector<1x8xf32>
    %10 = vector.broadcast %9 : vector<1x8xf32> to vector<32x8xf32>
    %11 = arith.addf %8, %10 : vector<32x8xf32>
    %12 = math.tanh %11 : vector<32x8xf32>
    %13 = vector.shape_cast %12 : vector<32x8xf32> to vector<2x16x8xf32>
    %14 = arith.truncf %13 : vector<2x16x8xf32> to vector<2x16x8xbf16>
    %cst_17 = arith.constant dense<0.000000e+00> : vector<2x16x16xf32>
    %15 = tpu.matmul %14, %14, %cst_17 {dimension_numbers = #tpu.dot_dimension_numbers<[2], [2], [1], [1], [0, 0, 0, 1, 1, 1], [0], [0]>} : vector<2x16x8xbf16>, vector<2x16x8xbf16>, vector<2x16x16xf32> -> vector<2x16x16xf32>
    %cst_18 = arith.constant dense<0xFF800000> : vector<2x16xf32>
    %16 = vector.multi_reduction <maximumf>, %15, %cst_18 [2] : vector<2x16x16xf32> to vector<2x16xf32>
    %17 = vector.shape_cast %16 : vector<2x16xf32> to vector<2x16x1xf32>
    %18 = vector.broadcast %17 : vector<2x16x1xf32> to vector<2x16x16xf32>
    %19 = arith.subf %15, %18 : vector<2x16x16xf32>
    %20 = math.exp %19 : vector<2x16x16xf32>
    %cst_19 = arith.constant dense<0.000000e+00> : vector<2x16xf32>
    %21 = vector.multi_reduction <add>, %20, %cst_19 [2] : vector<2x16x16xf32> to vector<2x16xf32>
    %22 = vector.shape_cast %21 : vector<2x16xf32> to vector<2x16x1xf32>
    %23 = tpu.reciprocal %22 {approx = true} : vector<2x16x1xf32> -> vector<2x16x1xf32>
    %24 = vector.broadcast %23 : vector<2x16x1xf32> to vector<2x16x16xf32>
    %25 = arith.mulf %20, %24 : vector<2x16x16xf32>
    %26 = arith.truncf %25 : vector<2x16x16xf32> to vector<2x16x16xbf16>
    %cst_20 = arith.constant dense<0.000000e+00> : vector<2x16x32xf32>
    %27 = tpu.matmul %26, %5, %cst_20 {dimension_numbers = #tpu.dot_dimension_numbers<[2], [1], [1], [2], [0, 0, 0, 1, 1, 2], [0], [0]>} : vector<2x16x16xbf16>, vector<2x16x32xbf16>, vector<2x16x32xf32> -> vector<2x16x32xf32>
    %28 = vector.shape_cast %27 : vector<2x16x32xf32> to vector<32x32xf32>
    %29 = arith.truncf %28 : vector<32x32xf32> to vector<32x32xbf16>
    %c0_21 = arith.constant 0 : index
    %c0_22 = arith.constant 0 : index
    %30 = vector.load %arg5[%c0_21, %c0_22] : memref<32x32xbf16, #tpu.memory_space<vmem>>, vector<32x32xbf16>
    %cst_23 = arith.constant dense<0.000000e+00> : vector<32x32xf32>
    %31 = tpu.matmul %29, %30, %cst_23 {dimension_numbers = #tpu.dot_dimension_numbers<[1], [0], [0], [1], [0, 0, 1, 1], [], []>} : vector<32x32xbf16>, vector<32x32xbf16>, vector<32x32xf32> -> vector<32x32xf32>
    %c0_24 = arith.constant 0 : index
    %c0_25 = arith.constant 0 : index
    %32 = vector.load %arg6[%c0_24, %c0_25] : memref<1x32xf32, #tpu.memory_space<vmem>>, vector<1x32xf32>
    %33 = vector.broadcast %32 : vector<1x32xf32> to vector<32x32xf32>
    %34 = arith.addf %31, %33 : vector<32x32xf32>
    %cst_26 = arith.constant 0.000000e+00 : f32
    %35 = vector.broadcast %cst_26 : f32 to vector<32x32xf32>
    %36 = arith.maximumf %34, %35 : vector<32x32xf32>
    %37 = vector.shape_cast %36 : vector<32x32xf32> to vector<2x16x32xf32>
    %cst_27 = arith.constant dense<0.000000e+00> : vector<2x32xf32>
    %38 = vector.multi_reduction <add>, %37, %cst_27 [1] : vector<2x16x32xf32> to vector<2x32xf32>
    %cst_28 = arith.constant 1.600000e+01 : f32
    %39 = vector.broadcast %cst_28 : f32 to vector<2x32xf32>
    %40 = arith.divf %38, %39 : vector<2x32xf32>
    %c0_29 = arith.constant 0 : index
    %c0_30 = arith.constant 0 : index
    %41 = vector.load %arg7[%c0_29, %c0_30] : memref<2x32xf32, #tpu.memory_space<vmem>>, vector<2x32xf32>
    tpu.vector_store %arg7[%c0_29, %c0_30], %40 {strides = array<i32>} : memref<2x32xf32, #tpu.memory_space<vmem>>, vector<2x32xf32>,
    return
  }
  func.func @transform_0(%arg0: i32) -> (i32, i32, i32) {
    %c0_i32 = arith.constant 0 : i32
    %c0_i32_0 = arith.constant 0 : i32
    %c0_i32_1 = arith.constant 0 : i32
    return %arg0, %c0_i32, %c0_i32_0 : i32, i32, i32
  }
  func.func @transform_1(%arg0: i32) -> (i32, i32, i32) {
    %c0_i32 = arith.constant 0 : i32
    %c0_i32_0 = arith.constant 0 : i32
    %c0_i32_1 = arith.constant 0 : i32
    return %arg0, %c0_i32, %c0_i32_0 : i32, i32, i32
  }
  func.func @transform_2(%arg0: i32) -> (i32, i32) {
    %c0_i32 = arith.constant 0 : i32
    %c0_i32_0 = arith.constant 0 : i32
    %c0_i32_1 = arith.constant 0 : i32
    return %c0_i32, %c0_i32_0 : i32, i32
  }
  func.func @transform_3(%arg0: i32) -> (i32, i32) {
    %c0_i32 = arith.constant 0 : i32
    %c0_i32_0 = arith.constant 0 : i32
    %c0_i32_1 = arith.constant 0 : i32
    return %c0_i32, %c0_i32_0 : i32, i32
  }
  func.func @transform_4(%arg0: i32) -> (i32, i32) {
    %c0_i32 = arith.constant 0 : i32
    %c0_i32_0 = arith.constant 0 : i32
    %c0_i32_1 = arith.constant 0 : i32
    return %c0_i32, %c0_i32_0 : i32, i32
  }
  func.func @transform_5(%arg0: i32) -> (i32, i32) {
    %c0_i32 = arith.constant 0 : i32
    %c0_i32_0 = arith.constant 0 : i32
    %c0_i32_1 = arith.constant 0 : i32
    return %c0_i32, %c0_i32_0 : i32, i32
  }
  func.func @transform_6(%arg0: i32) -> (i32, i32) {
    %c0_i32 = arith.constant 0 : i32
    %c0_i32_0 = arith.constant 0 : i32
    return %arg0, %c0_i32 : i32, i32
  }
}

</mosaic_0001>

<llo_original>
// kernel: tpu_custom_call.1
$region0: #{tpu_custom_call.1}
  #allocation0 [shape = 'u32[]', space=smem, size = 0x4, offset = 0x4, fixed_abs, tag = 'smem constant byte address 0x4 - core index']
  #allocation1 [shape = 'u32[144,128]{1,0:T(1,128)}', space=vmem, size = 0x12000, scoped, tag = 'internal scratch']
  #allocation2 [shape = 'f32[2,16,32]{2,1,0:T(8,128)}', space=vmem, size = 0x4000, scoped, tag = 'scratch operand']
  %s0 = inlined_call_operand.vmem [shape: f32[2,8,32], index: 0, kind: input, shape index: {}]
  %s1 = inlined_call_operand.hbm [shape: f32[2,8,32], index: 1, kind: input, shape index: {}]
  %s2 = inlined_call_operand.vmem [shape: bf16[32,8], index: 2, kind: input, shape index: {}]
  %s3 = inlined_call_operand.vmem [shape: f32[1,8], index: 3, kind: input, shape index: {}]
  %s4 = inlined_call_operand.vmem [shape: bf16[32,32], index: 4, kind: input, shape index: {}]
  %s5 = inlined_call_operand.vmem [shape: f32[1,32], index: 5, kind: input, shape index: {}]
  %s6 = inlined_call_operand.hbm [shape: f32[2,32], index: 6, kind: output, shape index: {}]
  %s7 = sld [smem:[#allocation0]]
  $region38: #{tpu_custom_call.1} parent=0
    _
  %s9 = ssub.s32 1, %s7
  %s10 = scalar_select 0, %s9, %s7
  $region1: #{tpu_custom_call.1} parent=0
    #allocation3 [shape = 'u8[8192]{0}', space=vmem, size = 0x2000, scoped, tag = 'input window, operand 1, single buffered']
    #allocation4 [shape = 's32[1]{0}', space=sflag, size = 0x4, scoped, tag = 'scoped memory for tpu_custom_call.1']
    #allocation5 [shape = 's32[1]{0}', space=sflag, size = 0x4, scoped, tag = 'scoped memory for tpu_custom_call.1']
    #allocation6 [shape = 'u8[1024]{0}', space=vmem, size = 0x400, scoped, tag = 'output window, operand 0, single buffered']
    %11 = vsyncpa [#allocation4], 0
    %12 = vsyncpa [#allocation5], 0
    // Predicated region
    $region2: #{tpu_custom_call.1} parent=1 // pred_check
      _
    $region3: #{tpu_custom_call.1} parent=1 // pred_check_branch
      %14 = sbr.rel (0) target = $region5
    $region4: #{tpu_custom_call.1} parent=1 // pred_region
      _
    $region5: #{tpu_custom_call.1} parent=1 // pred_fallthru
      _
    // Predicated region
    $region6: #{tpu_custom_call.1} parent=1 // pred_check
      _
    $region7: #{tpu_custom_call.1} parent=1 // pred_check_branch
      %16 = sbr.rel (0) target = $region9
    $region8: #{tpu_custom_call.1} parent=1 // pred_region
      %s18 = ssub.s32 256, 256
      %19 = vsyncadd [#allocation4], %s18
      %s20 = sshll.u32 [#allocation3], 4
      %s21 = int_to_ptr.vmem [resolvable:$true] %s20
      %26 = dma.hbm_to_vmem [thread:$0]  %s1, 256, %s21, [#allocation4], 128, 128, 8
    $region9: #{tpu_custom_call.1} parent=1 // pred_fallthru
      _
    // Predicated region
    $region10: #{tpu_custom_call.1} parent=1 // pred_check
      _
    $region11: #{tpu_custom_call.1} parent=1 // pred_check_branch
      %28 = sbr.rel (0) target = $region13
    $region12: #{tpu_custom_call.1} parent=1 // pred_region
      _
    $region13: #{tpu_custom_call.1} parent=1 // pred_fallthru
      _
    // Predicated region
    $region14: #{tpu_custom_call.1} parent=1 // pred_check
      _
    $region15: #{tpu_custom_call.1} parent=1 // pred_check_branch
      %30 = sbr.rel (0) target = $region17
    $region16: #{tpu_custom_call.1} parent=1 // pred_region
      _
    $region17: #{tpu_custom_call.1} parent=1 // pred_fallthru
      _
    // Predicated region
    $region18: #{tpu_custom_call.1} parent=1 // pred_check
      _
    $region19: #{tpu_custom_call.1} parent=1 // pred_check_branch
      %32 = sbr.rel (0) target = $region21
    $region20: #{tpu_custom_call.1} parent=1 // pred_region
      _
    $region21: #{tpu_custom_call.1} parent=1 // pred_fallthru
      _
    // Predicated region
    $region22: #{tpu_custom_call.1} parent=1 // pred_check
      _
    $region23: #{tpu_custom_call.1} parent=1 // pred_check_branch
      %34 = sbr.rel (0) target = $region25
    $region24: #{tpu_custom_call.1} parent=1 // pred_region
      _
    $region25: #{tpu_custom_call.1} parent=1 // pred_fallthru
      _
    // Predicated region
    $region26: #{tpu_custom_call.1} parent=1 // pred_check
      _
    $region27: #{tpu_custom_call.1} parent=1 // pred_check_branch
      %36 = sbr.rel (0) target = $region29
    $region28: #{tpu_custom_call.1} parent=1 // pred_region
      %37 = dma.done [#allocation4], 256
    $region29: #{tpu_custom_call.1} parent=1 // pred_fallthru
      _
    %v39 = vld [vmem:[%s0] sm:$0xff]
    %v40 = vld [vmem:[%s0 + $0x8] sm:$0xff]
    %vm41 = vcmask 261120
    %42 = vst.msk [vmem:[#allocation2] sm:$0xff] %vm41, %v39
    %43 = vst.msk [vmem:[#allocation2 + $0x10] sm:$0xff] %vm41, %v40
    %v44 = vld [vmem:[#allocation3] sm:$0xff]
    %v45 = vld [vmem:[#allocation3 + $0x8] sm:$0xff]
    %46 = vst.msk [vmem:[#allocation2 + $0x8] sm:$0xff] %vm41, %v44
    %47 = vst.msk [vmem:[#allocation2 + $0x18] sm:$0xff] %vm41, %v45
    %v48 = vld [vmem:[#allocation2] sm:$0xff]
    %v49 = vld [vmem:[#allocation2 + $0x8] sm:$0xff]
    %v50 = vld [vmem:[#allocation2 + $0x10] sm:$0xff]
    %v51 = vld [vmem:[#allocation2 + $0x18] sm:$0xff]
    %v52 = vpack.c.bf16 %v49, %v48
    %v53 = vpack.c.bf16 %v51, %v50
    %v54 = vld [vmem:[%s2] sm:$0xf]
    %v55 = vld [vmem:[%s2 + $0x4] sm:$0xf]
    %v56 = vld [vmem:[%s2 + $0x8] sm:$0xf]
    %v57 = vld [vmem:[%s2 + $0xc] sm:$0xf]
    %v58 = vld [vmem:[%s3] sm:$0x1]
    %v60 = vlaneseq
    %v61 = vshrl.u32 %v60, 7
    %v62 = vsub.s32 0, %v61
    %v63 = vrot.slane %v58, %v62
    %v69 = vunpack.c.l.b16 %v54
    %v70 = vunpack.c.l.b16 %v55
    %v71 = vunpack.c.l.b16 %v56
    %v72 = vunpack.c.l.b16 %v57
    %v73 = vpack.c.b16 %v70, %v69
    %v74 = vpack.c.b16 %v72, %v71
    %v78 = vsel %vm41, %v52, 0
    %v81 = vsel %vm41, %v53, 0
    %83 = vmatprep.subr.bf16.mxu0 0
    %84 = vmatpush1.bf16.msra.mxu0 %v73
    %85 = vmatprep.subr.bf16.mxu0 0
    %86 = vmatpush1.bf16.msra.mxu0 %v74
    %87 = vmatprep.subr.bf16.mxu0 0
    %88 = vmatpush1.bf16.msra.mxu0 0
    %89 = vmatprep.subr.bf16.mxu0 0
    %90 = vmatpush1.bf16.msra.mxu0 0
    %91 = vmatprep.subr.bf16.mxu0 0
    %92 = vmatpush1.bf16.msra.mxu0 0
    %93 = vmatprep.subr.bf16.mxu0 0
    %94 = vmatpush1.bf16.msra.mxu0 0
    %95 = vmatprep.subr.bf16.mxu0 0
    %96 = vmatpush1.bf16.msra.mxu0 0
    %97 = vmatprep.subr.bf16.mxu0 0
    %98 = vmatpush1.bf16.msra.mxu0 0
    %99 = vmatprep.subr.bf16.mxu0 0
    %100 = vmatpush1.bf16.msra.mxu0 0
    %101 = vmatprep.subr.bf16.mxu0 0
    %102 = vmatpush1.bf16.msra.mxu0 0
    %103 = vmatprep.subr.bf16.mxu0 0
    %104 = vmatpush1.bf16.msra.mxu0 0
    %105 = vmatprep.subr.bf16.mxu0 0
    %106 = vmatpush1.bf16.msra.mxu0 0
    %107 = vmatprep.subr.bf16.mxu0 0
    %108 = vmatpush1.bf16.msra.mxu0 0
    %109 = vmatprep.subr.bf16.mxu0 0
    %110 = vmatpush1.bf16.msra.mxu0 0
    %111 = vmatprep.subr.bf16.mxu0 0
    %112 = vmatpush1.bf16.msra.mxu0 0
    %113 = vmatprep.subr.bf16.mxu0 0
    %114 = vmatpush1.bf16.msra.mxu0 0
    %115 = vmatprep.mubr.bf16.mxu0 0
    %116 = vmatmul.mubr.bf16.gmra.mrb[0].mxu0 %v78
    %v117 = vpop.f32.mrb[0].mxu0
    %v118 = vadd.f32 %v63, %v117
    %v119 = vpop.f32.mrb[0].mxu0
    %v120 = vpop.f32.mrb[0].mxu0
    %v121 = vadd.f32 %v63, %v120
    %v122 = vpop.f32.mrb[0].mxu0
    %123 = vmatprep.mubr.bf16.mxu0 0
    %124 = vmatmul.mubr.bf16.gmra.mrb[0].mxu0 %v81
    %v125 = vpop.f32.mrb[0].mxu0
    %v126 = vadd.f32 %v63, %v125
    %v127 = vpop.f32.mrb[0].mxu0
    %v128 = vpop.f32.mrb[0].mxu0
    %v129 = vadd.f32 %v63, %v128
    %v130 = vpop.f32.mrb[0].mxu0
    %131 = vdwg.mxu0
    %v132 = vtanh.pop %v118
    %v133 = vtanh.pop %v121
    %v134 = vtanh.pop %v126
    %v135 = vtanh.pop %v129
    %v136 = vpack.c.bf16 %v133, %v132
    %v137 = vpack.c.bf16 %v135, %v134
    %vm138 = vcmask 64512
    %v140 = vsel %vm138, %v136, 0
    %142 = vmatprep.subr.bf16.mxu0 0
    %143 = vmatpush1.bf16.xpose.msra.mxu0 %v140
    %144 = vmatprep.subr.bf16.mxu0 0
    %145 = vmatpush1.bf16.xpose.msra.mxu0 0
    %146 = vmatprep.subr.bf16.mxu0 0
    %147 = vmatpush1.bf16.xpose.msra.mxu0 0
    %148 = vmatprep.subr.bf16.mxu0 0
    %149 = vmatpush1.bf16.xpose.msra.mxu0 0
    %150 = vmatprep.subr.bf16.mxu0 0
    %151 = vmatpush1.bf16.xpose.msra.mxu0 0
    %152 = vmatprep.subr.bf16.mxu0 0
    %153 = vmatpush1.bf16.xpose.msra.mxu0 0
    %154 = vmatprep.subr.bf16.mxu0 0
    %155 = vmatpush1.bf16.xpose.msra.mxu0 0
    %156 = vmatprep.subr.bf16.mxu0 0
    %157 = vmatpush1.bf16.xpose.msra.mxu0 0
    %158 = vmatprep.subr.bf16.mxu0 0
    %159 = vmatpush1.bf16.xpose.msra.mxu0 0
    %160 = vmatprep.subr.bf16.mxu0 0
    %161 = vmatpush1.bf16.xpose.msra.mxu0 0
    %162 = vmatprep.subr.bf16.mxu0 0
    %163 = vmatpush1.bf16.xpose.msra.mxu0 0
    %164 = vmatprep.subr.bf16.mxu0 0
    %165 = vmatpush1.bf16.xpose.msra.mxu0 0
    %166 = vmatprep.subr.bf16.mxu0 0
    %167 = vmatpush1.bf16.xpose.msra.mxu0 0
    %168 = vmatprep.subr.bf16.mxu0 0
    %169 = vmatpush1.bf16.xpose.msra.mxu0 0
    %170 = vmatprep.subr.bf16.mxu0 0
    %171 = vmatpush1.bf16.xpose.msra.mxu0 0
    %172 = vmatprep.subr.bf16.mxu0 0
    %173 = vmatpush1.bf16.xpose.msra.mxu0 0
    %174 = vmatprep.mubr.bf16.mxu0 0
    %175 = vmatmul.mubr.bf16.gmra.mrb[0].mxu0 %v140
    %v176 = vpop.f32.mrb[0].mxu0
    %v177 = vadd.f32 0.0, %v176
    %v178 = vpop.f32.mrb[0].mxu0
    %v179 = vpop.f32.mrb[0].mxu0
    %v180 = vadd.f32 0.0, %v179
    %v181 = vpop.f32.mrb[0].mxu0
    %182 = vdwg.mxu0
    %v184 = vsel %vm138, %v137, 0
    %186 = vmatprep.subr.bf16.mxu0 0
    %187 = vmatpush1.bf16.xpose.msra.mxu0 %v184
    %188 = vmatprep.subr.bf16.mxu0 0
    %189 = vmatpush1.bf16.xpose.msra.mxu0 0
    %190 = vmatprep.subr.bf16.mxu0 0
    %191 = vmatpush1.bf16.xpose.msra.mxu0 0
    %192 = vmatprep.subr.bf16.mxu0 0
    %193 = vmatpush1.bf16.xpose.msra.mxu0 0
    %194 = vmatprep.subr.bf16.mxu0 0
    %195 = vmatpush1.bf16.xpose.msra.mxu0 0
    %196 = vmatprep.subr.bf16.mxu0 0
    %197 = vmatpush1.bf16.xpose.msra.mxu0 0
    %198 = vmatprep.subr.bf16.mxu0 0
    %199 = vmatpush1.bf16.xpose.msra.mxu0 0
    %200 = vmatprep.subr.bf16.mxu0 0
    %201 = vmatpush1.bf16.xpose.msra.mxu0 0
    %202 = vmatprep.subr.bf16.mxu0 0
    %203 = vmatpush1.bf16.xpose.msra.mxu0 0
    %204 = vmatprep.subr.bf16.mxu0 0
    %205 = vmatpush1.bf16.xpose.msra.mxu0 0
    %206 = vmatprep.subr.bf16.mxu0 0
    %207 = vmatpush1.bf16.xpose.msra.mxu0 0
    %208 = vmatprep.subr.bf16.mxu0 0
    %209 = vmatpush1.bf16.xpose.msra.mxu0 0
    %210 = vmatprep.subr.bf16.mxu0 0
    %211 = vmatpush1.bf16.xpose.msra.mxu0 0
    %212 = vmatprep.subr.bf16.mxu0 0
    %213 = vmatpush1.bf16.xpose.msra.mxu0 0
    %214 = vmatprep.subr.bf16.mxu0 0
    %215 = vmatpush1.bf16.xpose.msra.mxu0 0
    %216 = vmatprep.subr.bf16.mxu0 0
    %217 = vmatpush1.bf16.xpose.msra.mxu0 0
    %218 = vmatprep.mubr.bf16.mxu0 0
    %219 = vmatmul.mubr.bf16.gmra.mrb[0].mxu0 %v184
    %v220 = vpop.f32.mrb[0].mxu0
    %v221 = vadd.f32 0.0, %v220
    %v222 = vpop.f32.mrb[0].mxu0
    %v223 = vpop.f32.mrb[0].mxu0
    %v224 = vadd.f32 0.0, %v223
    %v225 = vpop.f32.mrb[0].mxu0
    %226 = vdwg.mxu0
    %vm227 = vcmask 130048
    %v228 = vsel %vm227, %v177, -inf
    %229 = vmax.xlane.f32.xlu0 %v228
    %v230 = vpop.xlane.xlu0 %229
    %v231 = vsel %vm227, %v180, -inf
    %232 = vmax.xlane.f32.xlu0 %v231
    %v233 = vpop.xlane.xlu0 %232
    %v234 = vsel %vm227, %v221, -inf
    %235 = vmax.xlane.f32.xlu0 %v234
    %v236 = vpop.xlane.xlu0 %235
    %v237 = vsel %vm227, %v224, -inf
    %238 = vmax.xlane.f32.xlu0 %v237
    %v239 = vpop.xlane.xlu0 %238
    %v240 = vsub.f32 %v177, %v230
    %v241 = vsub.f32 %v180, %v233
    %v242 = vsub.f32 %v221, %v236
    %v243 = vsub.f32 %v224, %v239
    %v244 = vmul.f32 %v240, 1.442695
    %v245 = vpow.pop %v244
    %v246 = vmul.f32 %v241, 1.442695
    %v247 = vpow.pop %v246
    %v248 = vmul.f32 %v242, 1.442695
    %v249 = vpow.pop %v248
    %v250 = vmul.f32 %v243, 1.442695
    %v251 = vpow.pop %v250
    %v252 = vsel %vm227, %v245, 0.0
    %253 = vadd.xlane.f32.xlu0 %v252
    %v254 = vpop.xlane.xlu0 %253
    %v255 = vsel %vm227, %v247, 0.0
    %256 = vadd.xlane.f32.xlu0 %v255
    %v257 = vpop.xlane.xlu0 %256
    %v258 = vsel %vm227, %v249, 0.0
    %259 = vadd.xlane.f32.xlu0 %v258
    %v260 = vpop.xlane.xlu0 %259
    %v261 = vsel %vm227, %v251, 0.0
    %262 = vadd.xlane.f32.xlu0 %v261
    %v263 = vpop.xlane.xlu0 %262
    %v264 = vrcp.pop %v254
    %v265 = vrcp.pop %v257
    %v266 = vrcp.pop %v260
    %v267 = vrcp.pop %v263
    %v268 = vmul.f32 %v245, %v264
    %v269 = vmul.f32 %v247, %v265
    %v270 = vmul.f32 %v249, %v266
    %v271 = vmul.f32 %v251, %v267
    %v272 = vpack.c.bf16 %v269, %v268
    %v273 = vpack.c.bf16 %v271, %v270
    %v275 = vsel %vm227, %v272, 0
    %277 = vmatprep.subr.bf16.mxu0 0
    %278 = vmatpush1.bf16.msra.mxu0 %v52
    %279 = vmatprep.subr.bf16.mxu0 0
    %280 = vmatpush1.bf16.msra.mxu0 0
    %281 = vmatprep.subr.bf16.mxu0 0
    %282 = vmatpush1.bf16.msra.mxu0 0
    %283 = vmatprep.subr.bf16.mxu0 0
    %284 = vmatpush1.bf16.msra.mxu0 0
    %285 = vmatprep.subr.bf16.mxu0 0
    %286 = vmatpush1.bf16.msra.mxu0 0
    %287 = vmatprep.subr.bf16.mxu0 0
    %288 = vmatpush1.bf16.msra.mxu0 0
    %289 = vmatprep.subr.bf16.mxu0 0
    %290 = vmatpush1.bf16.msra.mxu0 0
    %291 = vmatprep.subr.bf16.mxu0 0
    %292 = vmatpush1.bf16.msra.mxu0 0
    %293 = vmatprep.subr.bf16.mxu0 0
    %294 = vmatpush1.bf16.msra.mxu0 0
    %295 = vmatprep.subr.bf16.mxu0 0
    %296 = vmatpush1.bf16.msra.mxu0 0
    %297 = vmatprep.subr.bf16.mxu0 0
    %298 = vmatpush1.bf16.msra.mxu0 0
    %299 = vmatprep.subr.bf16.mxu0 0
    %300 = vmatpush1.bf16.msra.mxu0 0
    %301 = vmatprep.subr.bf16.mxu0 0
    %302 = vmatpush1.bf16.msra.mxu0 0
    %303 = vmatprep.subr.bf16.mxu0 0
    %304 = vmatpush1.bf16.msra.mxu0 0
    %305 = vmatprep.subr.bf16.mxu0 0
    %306 = vmatpush1.bf16.msra.mxu0 0
    %307 = vmatprep.subr.bf16.mxu0 0
    %308 = vmatpush1.bf16.msra.mxu0 0
    %309 = vmatprep.mubr.bf16.mxu0 0
    %310 = vmatmul.mubr.bf16.gmra.mrb[0].mxu0 %v275
    %v311 = vpop.f32.mrb[0].mxu0
    %v312 = vadd.f32 0.0, %v311
    %v313 = vpop.f32.mrb[0].mxu0
    %v314 = vpop.f32.mrb[0].mxu0
    %v315 = vadd.f32 0.0, %v314
    %v316 = vpop.f32.mrb[0].mxu0
    %317 = vdwg.mxu0
    %v319 = vsel %vm227, %v273, 0
    %321 = vmatprep.subr.bf16.mxu0 0
    %322 = vmatpush1.bf16.msra.mxu0 %v53
    %323 = vmatprep.subr.bf16.mxu0 0
    %324 = vmatpush1.bf16.msra.mxu0 0
    %325 = vmatprep.subr.bf16.mxu0 0
    %326 = vmatpush1.bf16.msra.mxu0 0
    %327 = vmatprep.subr.bf16.mxu0 0
    %328 = vmatpush1.bf16.msra.mxu0 0
    %329 = vmatprep.subr.bf16.mxu0 0
    %330 = vmatpush1.bf16.msra.mxu0 0
    %331 = vmatprep.subr.bf16.mxu0 0
    %332 = vmatpush1.bf16.msra.mxu0 0
    %333 = vmatprep.subr.bf16.mxu0 0
    %334 = vmatpush1.bf16.msra.mxu0 0
    %335 = vmatprep.subr.bf16.mxu0 0
    %336 = vmatpush1.bf16.msra.mxu0 0
    %337 = vmatprep.subr.bf16.mxu0 0
    %338 = vmatpush1.bf16.msra.mxu0 0
    %339 = vmatprep.subr.bf16.mxu0 0
    %340 = vmatpush1.bf16.msra.mxu0 0
    %341 = vmatprep.subr.bf16.mxu0 0
    %342 = vmatpush1.bf16.msra.mxu0 0
    %343 = vmatprep.subr.bf16.mxu0 0
    %344 = vmatpush1.bf16.msra.mxu0 0
    %345 = vmatprep.subr.bf16.mxu0 0
    %346 = vmatpush1.bf16.msra.mxu0 0
    %347 = vmatprep.subr.bf16.mxu0 0
    %348 = vmatpush1.bf16.msra.mxu0 0
    %349 = vmatprep.subr.bf16.mxu0 0
    %350 = vmatpush1.bf16.msra.mxu0 0
    %351 = vmatprep.subr.bf16.mxu0 0
    %352 = vmatpush1.bf16.msra.mxu0 0
    %353 = vmatprep.mubr.bf16.mxu0 0
    %354 = vmatmul.mubr.bf16.gmra.mrb[0].mxu0 %v319
    %v355 = vpop.f32.mrb[0].mxu0
    %v356 = vadd.f32 0.0, %v355
    %v357 = vpop.f32.mrb[0].mxu0
    %v358 = vpop.f32.mrb[0].mxu0
    %v359 = vadd.f32 0.0, %v358
    %v360 = vpop.f32.mrb[0].mxu0
    %361 = vdwg.mxu0
    %v362 = vpack.c.bf16 %v315, %v312
    %v363 = vpack.c.bf16 %v359, %v356
    %v364 = vld [vmem:[%s4] sm:$0xf]
    %v365 = vld [vmem:[%s4 + $0x4] sm:$0xf]
    %v366 = vld [vmem:[%s4 + $0x8] sm:$0xf]
    %v367 = vld [vmem:[%s4 + $0xc] sm:$0xf]
    %v368 = vld [vmem:[%s5] sm:$0x1]
    %v370 = vlaneseq
    %v371 = vshrl.u32 %v370, 7
    %v372 = vsub.s32 0, %v371
    %v373 = vrot.slane %v368, %v372
    %v379 = vunpack.c.l.b16 %v364
    %v380 = vunpack.c.l.b16 %v365
    %v381 = vunpack.c.l.b16 %v366
    %v382 = vunpack.c.l.b16 %v367
    %v383 = vpack.c.b16 %v380, %v379
    %v384 = vpack.c.b16 %v382, %v381
    %v388 = vsel %vm41, %v362, 0
    %v391 = vsel %vm41, %v363, 0
    %393 = vmatprep.subr.bf16.mxu0 0
    %394 = vmatpush1.bf16.msra.mxu0 %v383
    %395 = vmatprep.subr.bf16.mxu0 0
    %396 = vmatpush1.bf16.msra.mxu0 %v384
    %397 = vmatprep.subr.bf16.mxu0 0
    %398 = vmatpush1.bf16.msra.mxu0 0
    %399 = vmatprep.subr.bf16.mxu0 0
    %400 = vmatpush1.bf16.msra.mxu0 0
    %401 = vmatprep.subr.bf16.mxu0 0
    %402 = vmatpush1.bf16.msra.mxu0 0
    %403 = vmatprep.subr.bf16.mxu0 0
    %404 = vmatpush1.bf16.msra.mxu0 0
    %405 = vmatprep.subr.bf16.mxu0 0
    %406 = vmatpush1.bf16.msra.mxu0 0
    %407 = vmatprep.subr.bf16.mxu0 0
    %408 = vmatpush1.bf16.msra.mxu0 0
    %409 = vmatprep.subr.bf16.mxu0 0
    %410 = vmatpush1.bf16.msra.mxu0 0
    %411 = vmatprep.subr.bf16.mxu0 0
    %412 = vmatpush1.bf16.msra.mxu0 0
    %413 = vmatprep.subr.bf16.mxu0 0
    %414 = vmatpush1.bf16.msra.mxu0 0
    %415 = vmatprep.subr.bf16.mxu0 0
    %416 = vmatpush1.bf16.msra.mxu0 0
    %417 = vmatprep.subr.bf16.mxu0 0
    %418 = vmatpush1.bf16.msra.mxu0 0
    %419 = vmatprep.subr.bf16.mxu0 0
    %420 = vmatpush1.bf16.msra.mxu0 0
    %421 = vmatprep.subr.bf16.mxu0 0
    %422 = vmatpush1.bf16.msra.mxu0 0
    %423 = vmatprep.subr.bf16.mxu0 0
    %424 = vmatpush1.bf16.msra.mxu0 0
    %425 = vmatprep.mubr.bf16.mxu0 0
    %426 = vmatmul.mubr.bf16.gmra.mrb[0].mxu0 %v388
    %v427 = vpop.f32.mrb[0].mxu0
    %v428 = vadd.f32 %v373, %v427
    %v429 = vpop.f32.mrb[0].mxu0
    %v430 = vpop.f32.mrb[0].mxu0
    %v431 = vadd.f32 %v373, %v430
    %v432 = vpop.f32.mrb[0].mxu0
    %433 = vmatprep.mubr.bf16.mxu0 0
    %434 = vmatmul.mubr.bf16.gmra.mrb[0].mxu0 %v391
    %v435 = vpop.f32.mrb[0].mxu0
    %v436 = vadd.f32 %v373, %v435
    %v437 = vpop.f32.mrb[0].mxu0
    %v438 = vpop.f32.mrb[0].mxu0
    %v439 = vadd.f32 %v373, %v438
    %v440 = vpop.f32.mrb[0].mxu0
    %441 = vdwg.mxu0
    %v442 = vmax.f32 %v428, 0.0
    %v443 = vmax.f32 %v431, 0.0
    %v444 = vmax.f32 %v436, 0.0
    %v445 = vmax.f32 %v439, 0.0
    %v446 = vsel %vm41, %v442, 0.0
    %v447 = vsel %vm41, %v443, 0.0
    %v448 = vadd.f32 %v446, %v447
    %v449 = vrot.slane %v448, 4
    %v450 = vadd.f32 %v448, %v449
    %v451 = vrot.slane %v450, 2
    %v452 = vadd.f32 %v450, %v451
    %v453 = vrot.slane %v452, 1
    %v454 = vadd.f32 %v452, %v453
    %v455 = vsel %vm41, %v444, 0.0
    %v456 = vsel %vm41, %v445, 0.0
    %v457 = vadd.f32 %v455, %v456
    %v458 = vrot.slane %v457, 4
    %v459 = vadd.f32 %v457, %v458
    %v460 = vrot.slane %v459, 2
    %v461 = vadd.f32 %v459, %v460
    %v462 = vrot.slane %v461, 1
    %v463 = vadd.f32 %v461, %v462
    %v464 = vrcp.pop 16.0
    %v465 = vmul.f32 %v454, %v464
    %v466 = vmul.f32 %v463, %v464
    %vm469 = vcmask 1041409
    %v470 = vsel %vm469, %v466, %v465
    %vm472 = vcmask 254976
    %473 = vst.msk [vmem:[#allocation6] sm:$0x3] %vm472, %v470
    // Predicated region
    $region30: #{tpu_custom_call.1} parent=1 // pred_check
      _
    $region31: #{tpu_custom_call.1} parent=1 // pred_check_branch
      %475 = sbr.rel (0) target = $region33
    $region32: #{tpu_custom_call.1} parent=1 // pred_region
      %s477 = ssub.s32 32, 32
      %478 = vsyncadd [#allocation5], %s477
      %s480 = sshll.u32 [#allocation6], 4
      %s481 = int_to_ptr.vmem [resolvable:$true] %s480
      %483 = dma.vmem_to_hbm [thread:$0]  %s481, 32, %s6, [#allocation5]
    $region33: #{tpu_custom_call.1} parent=1 // pred_fallthru
      _
    // Predicated region
    $region34: #{tpu_custom_call.1} parent=1 // pred_check
      _
    $region35: #{tpu_custom_call.1} parent=1 // pred_check_branch
      %485 = sbr.rel (0) target = $region37
    $region36: #{tpu_custom_call.1} parent=1 // pred_region
      %486 = dma.done [#allocation5], 32
    $region37: #{tpu_custom_call.1} parent=1 // pred_fallthru
      _
    %487 = vsyncpa [#allocation4], 1
    %488 = vsyncpa [#allocation5], 1

</llo_original>
